<compile_context>
chip_gen: v7x
topology: tpu7x:2x2x1
jax: 0.10.0
libtpu: 0.0.40
codegen_flags: <defaults>
</compile_context>

<pallas_src>
from functools import partial

import jax
import jax.numpy as jnp
from jax.experimental import pallas as pl
from jax.experimental.pallas import tpu as pltpu


def _drop_path_kernel(scale_ref, x_ref, o_ref):
    # scale_ref: (TB, 1) float32  -- per-sample 0 or 1/keep_prob
    # x_ref, o_ref: (TB, TF) in the input dtype
    s = scale_ref[...].astype(x_ref.dtype)        # (TB, 1) broadcasts over lanes
    o_ref[...] = x_ref[...] * s


def _choose_tiles(batch, feat, itemsize):
    """Pick a lane-dense ~1 MiB block that satisfies the (8, 128) constraint."""
    max_lanes = 8192                               # multiple of 128
    tf = feat if feat <= max_lanes else max_lanes  # == full dim, or 128-multiple
    target_bytes = 1 << 20                         # ~1 MiB per block
    rows = max(1, target_bytes // max(1, tf * itemsize))
    if rows >= batch:
        tb = batch                                 # == full dim
    else:
        tb = max(8, (rows // 8) * 8)               # multiple of 8
    return tb, tf


def drop_path_pallas(x, key, drop_prob: float = 0.0, training: bool = True):
    """Pallas DropPath. `key` is a jax.random PRNG key."""
    if drop_prob == 0.0 or not training:
        return x  # identity path, exactly like the PyTorch module in eval mode

    keep_prob = 1.0 - drop_prob
    orig_shape = x.shape
    B = orig_shape[0]
    F = 1
    for d in orig_shape[1:]:
        F *= d

    # Per-sample keep decision (torch: floor(keep_prob + U[0,1))), hoisted out of
    # the tile loop so every tile of a sample sees the same decision.
    u = jax.random.uniform(key, (B,), dtype=jnp.float32)
    keep = jnp.floor(keep_prob + u)                      # {0., 1.}
    scale = (keep * (1.0 / keep_prob)).reshape(B, 1)     # f32 (B, 1)

    x2 = x.reshape(B, F)                                 # lane-dense 2-D view
    itemsize = jnp.dtype(x.dtype).itemsize
    TB, TF = _choose_tiles(B, F, itemsize)
    grid = (pl.cdiv(B, TB), pl.cdiv(F, TF))

    out = pl.pallas_call(
        _drop_path_kernel,
        out_shape=jax.ShapeDtypeStruct((B, F), x.dtype),
        grid=grid,
        in_specs=[
            pl.BlockSpec((TB, 1), lambda i, j: (i, 0)),    # per-sample scale
            pl.BlockSpec((TB, TF), lambda i, j: (i, j)),   # x tile
        ],
        out_specs=pl.BlockSpec((TB, TF), lambda i, j: (i, j)),
        compiler_params=pltpu.CompilerParams(
            # No cross-step state: both axes can shard across cores (v7x megacore).
            dimension_semantics=("parallel", "parallel"),
        ),
    )(scale, x2)

    return out.reshape(orig_shape)


class DropPath:
    """Minimal JAX counterpart of the torch DropPath module."""

    def __init__(self, drop_prob=None):
        self.drop_prob = 0.0 if drop_prob is None else float(drop_prob)
        self.training = True

    def __call__(self, x, key):
        return drop_path_pallas(x, key, self.drop_prob, self.training)


if __name__ == "__main__":
    key = jax.random.PRNGKey(0)
    kx, kmask = jax.random.split(key)

    B, N, D = 2, 8, 32  # small ViT-like token tensor
    x = jax.random.normal(kx, (B, N, D), dtype=jnp.float32)

    module = DropPath(drop_prob=0.25)
    out = jax.block_until_ready(module(x, kmask))

    # Sanity check: each sample is either all-zero (dropped) or x / keep_prob (kept).
    keep_prob = 1.0 - 0.25
    for b in range(B):
        dropped = bool(jnp.allclose(out[b], 0.0))
        kept = bool(jnp.allclose(out[b], x[b] / keep_prob, atol=1e-5))
        assert dropped or kept, "per-sample DropPath semantics violated"

    # Eval-mode / zero-prob identity path.
    module.training = False
    out_eval = jax.block_until_ready(module(x, kmask))
    assert bool(jnp.allclose(out_eval, x))

    print("KERNEL_OK")
</pallas_src>

<mosaic_0001>
module attributes {stable_mosaic.version = 11 : i64} {
  func.func @_drop_path_kernel(%arg0: i32, %arg1: i32, %arg2: memref<2x1xf32, #tpu.memory_space<vmem>>, %arg3: memref<2x256xf32, #tpu.memory_space<vmem>>, %arg4: memref<2x256xf32, #tpu.memory_space<vmem>>) attributes {dimension_semantics = [#tpu.dimension_semantics<parallel>, #tpu.dimension_semantics<parallel>], iteration_bounds = array<i64: 1, 1>, scalar_prefetch = 0 : i64, scratch_operands = 0 : i64, tpu.core_type = #tpu.core_type<tc>, window_params = [{transform_indices = @transform_0, window_bounds = array<i64: 2, 1>}, {transform_indices = @transform_1, window_bounds = array<i64: 2, 256>}, {transform_indices = @transform_2, window_bounds = array<i64: 2, 256>}]} {
    %c0 = arith.constant 0 : index
    %c0_0 = arith.constant 0 : index
    %0 = vector.load %arg2[%c0, %c0_0] : memref<2x1xf32, #tpu.memory_space<vmem>>, vector<2x1xf32>
    %c0_1 = arith.constant 0 : index
    %c0_2 = arith.constant 0 : index
    %1 = vector.load %arg3[%c0_1, %c0_2] : memref<2x256xf32, #tpu.memory_space<vmem>>, vector<2x256xf32>
    %2 = vector.broadcast %0 : vector<2x1xf32> to vector<2x256xf32>
    %3 = arith.mulf %1, %2 : vector<2x256xf32>
    %c0_3 = arith.constant 0 : index
    %c0_4 = arith.constant 0 : index
    %4 = vector.load %arg4[%c0_3, %c0_4] : memref<2x256xf32, #tpu.memory_space<vmem>>, vector<2x256xf32>
    tpu.vector_store %arg4[%c0_3, %c0_4], %3 {strides = array<i32>} : memref<2x256xf32, #tpu.memory_space<vmem>>, vector<2x256xf32>,
    return
  }
  func.func @transform_0(%arg0: i32, %arg1: i32) -> (i32, i32) {
    %c0_i32 = arith.constant 0 : i32
    %c0_i32_0 = arith.constant 0 : i32
    return %arg0, %c0_i32 : i32, i32
  }
  func.func @transform_1(%arg0: i32, %arg1: i32) -> (i32, i32) {
    %c0_i32 = arith.constant 0 : i32
    return %arg0, %arg1 : i32, i32
  }
  func.func @transform_2(%arg0: i32, %arg1: i32) -> (i32, i32) {
    %c0_i32 = arith.constant 0 : i32
    return %arg0, %arg1 : i32, i32
  }
}

</mosaic_0001>

<llo_original>
// kernel: tpu_custom_call.1
$region0: #{tpu_custom_call.1}
  #allocation0 [shape = 'u32[]', space=smem, size = 0x4, offset = 0x4, fixed_abs, tag = 'smem constant byte address 0x4 - core index']
  #allocation1 [shape = 'u32[144,128]{1,0:T(1,128)}', space=vmem, size = 0x12000, scoped, tag = 'internal scratch']
  %s0 = inlined_call_operand.vmem [shape: f32[2,1], index: 0, kind: input, shape index: {}]
  %s1 = inlined_call_operand.vmem [shape: f32[2,256], index: 1, kind: input, shape index: {}]
  %s2 = inlined_call_operand.hbm [shape: f32[2,256], index: 2, kind: output, shape index: {}]
  %s3 = sld [smem:[#allocation0]]
  $region18: #{tpu_custom_call.1} parent=0
    _
  %s5 = ssub.s32 1, %s3
  %s6 = scalar_select 0, %s5, %s3
  $region1: #{tpu_custom_call.1} parent=0
    #allocation2 [shape = 'u8[2048]{0}', space=vmem, size = 0x800, scoped, tag = 'output window, operand 0, single buffered']
    #allocation3 [shape = 's32[1]{0}', space=sflag, size = 0x4, scoped, tag = 'scoped memory for tpu_custom_call.1']
    %7 = vsyncpa [#allocation3], 0
    // Predicated region
    $region2: #{tpu_custom_call.1} parent=1 // pred_check
      _
    $region3: #{tpu_custom_call.1} parent=1 // pred_check_branch
      %9 = sbr.rel (0) target = $region5
    $region4: #{tpu_custom_call.1} parent=1 // pred_region
      _
    $region5: #{tpu_custom_call.1} parent=1 // pred_fallthru
      _
    // Predicated region
    $region6: #{tpu_custom_call.1} parent=1 // pred_check
      _
    $region7: #{tpu_custom_call.1} parent=1 // pred_check_branch
      %11 = sbr.rel (0) target = $region9
    $region8: #{tpu_custom_call.1} parent=1 // pred_region
      _
    $region9: #{tpu_custom_call.1} parent=1 // pred_fallthru
      _
    %v12 = vld [vmem:[%s0] sm:$0x3]
    %v13 = vld [vmem:[%s1] sm:$0xf]
    %15 = vset.pattern.permute.xlu0 0
    %16 = vperm.xlu0 %15, %v12
    %v17 = vpop.permute.xlu0 %16
    %v19 = vunpack.c.l.s4 269488144
    %v20 = vunpack.c.0.s8 %v19
    %v21 = vlaneseq
    %v22 = vshrl.u32 %v21, 7
    %v23 = vsub.s32 %v20, %v22
    %v24 = vrot.slane %v17, %v23
    %v26 = vmul.f32 %v13, %v24
    %27 = vst [vmem:[#allocation2] sm:$0xf] %v26
    // Predicated region
    $region10: #{tpu_custom_call.1} parent=1 // pred_check
      _
    $region11: #{tpu_custom_call.1} parent=1 // pred_check_branch
      %29 = sbr.rel (0) target = $region13
    $region12: #{tpu_custom_call.1} parent=1 // pred_region
      %s31 = ssub.s32 64, 64
      %32 = vsyncadd [#allocation3], %s31
      %s34 = sshll.u32 [#allocation2], 4
      %s35 = int_to_ptr.vmem [resolvable:$true] %s34
      %37 = dma.vmem_to_hbm [thread:$0]  %s35, 64, %s2, [#allocation3]
    $region13: #{tpu_custom_call.1} parent=1 // pred_fallthru
      _
    // Predicated region
    $region14: #{tpu_custom_call.1} parent=1 // pred_check
      _
    $region15: #{tpu_custom_call.1} parent=1 // pred_check_branch
      %39 = sbr.rel (0) target = $region17
    $region16: #{tpu_custom_call.1} parent=1 // pred_region
      %40 = dma.done [#allocation3], 64
    $region17: #{tpu_custom_call.1} parent=1 // pred_fallthru
      _
    %41 = vsyncpa [#allocation3], 1

</llo_original>
